<compile_context>
chip_gen: v6e
topology: v6e:2x2x1
jax: 0.10.0
libtpu: 0.0.40
codegen_flags: <defaults>
</compile_context>

<pallas_src>
import jax
import jax.numpy as jnp
from jax.experimental import pallas as pl
from jax.experimental.pallas import tpu as pltpu


def _relation_kernel(hq_ref, hk_ref, wqT_ref, bq_ref, wkT_ref, bk_ref, out_ref):
    # hq_ref: (TB, Ip, Hb)          hk_ref: (TB, Jp, Hb)
    # wqT_ref / wkT_ref: (Hb, Hhp)  pre-transposed, lane-padded nn.Linear weights
    # bq_ref / bk_ref: (1, Hhp)     float32, lane-padded with zeros
    # out_ref: (TB, Ip, Jp)         float32 (Ip sublane-dense, Jp lane-dense)
    tb, ti, hb = hq_ref.shape
    jp = hk_ref.shape[1]
    hhp = wqT_ref.shape[1]
    cdt = wqT_ref.dtype  # MXU-input dtype (f32, or bf16 on v6e/v7x)

    # Projections for all TB batches in one matmul each (M = TB*Ip / TB*Jp), f32 accumulation.
    q = jnp.dot(hq_ref[...].reshape(tb * ti, hb), wqT_ref[...],
                preferred_element_type=jnp.float32) + bq_ref[...]
    k = jnp.dot(hk_ref[...].reshape(tb * jp, hb), wkT_ref[...],
                preferred_element_type=jnp.float32) + bk_ref[...]

    q = q.reshape(tb, ti, hhp).astype(cdt)
    k = k.reshape(tb, jp, hhp).astype(cdt)

    # relation_score[b, i, j] = sum_d q[b, i, d] * k[b, j, d]   (f32 accumulation)
    out_ref[...] = jnp.einsum(
        'bid,bjd->bij', q, k, preferred_element_type=jnp.float32
    ).astype(out_ref.dtype)


def _pick_batch_tile(batch, per_batch_f32_elems, vmem_budget_elems=1_500_000):
    """Largest divisor of `batch` that (a) keeps the (double-buffered) block within a VMEM
    budget and (b) leaves >= 2 grid blocks when batch >= 2 so both v7x TensorCores get work."""
    cap = max(1, min(batch, vmem_budget_elems // max(1, per_batch_f32_elems)))
    target = min(cap, batch)
    if batch >= 2:
        target = min(target, pl.cdiv(batch, 2))
    tb = 1
    for d in range(1, target + 1):
        if batch % d == 0:
            tb = d
    return tb


def relation_extractor_forward(h_q, h_k, wq, bq, wk, bk, *, n_relations=1,
                               compute_dtype=jnp.float32):
    """h_q: (I, B, Hb), h_k: (J, B, Hb). Returns relation_score (B, I, J) float32."""
    if n_relations != 1:
        # The original module's .view(...) is only shape-consistent when n_relations == 1.
        # TODO(synk): pack extra relations along the lane axis (n_rel*Hh) if ever needed.
        raise NotImplementedError("RelationExtractor forward requires n_relations == 1")

    seq_i, batch, hb = h_q.shape
    seq_j = h_k.shape[0]
    hh = wq.shape[0]
    assert wq.shape == (hh, hb) and wk.shape == (hh, hb)
    assert bq.shape == (hh,) and bk.shape == (hh,)

    lane, sublane = 128, 8
    ip = pl.cdiv(seq_i, sublane) * sublane   # sublane-dense query rows
    jp = pl.cdiv(seq_j, lane) * lane         # lane-dense output width
    hhp = pl.cdiv(hh, lane) * lane           # lane-dense projection width / score contraction

    # --- wrapper-side layout plumbing (fused into the pallas_call inputs where possible) ---
    hq_b = jnp.transpose(h_q, (1, 0, 2)).astype(compute_dtype)        # (B, I, Hb)
    hk_b = jnp.transpose(h_k, (1, 0, 2)).astype(compute_dtype)        # (B, J, Hb)
    if ip != seq_i:
        hq_b = jnp.pad(hq_b, ((0, 0), (0, ip - seq_i), (0, 0)))       # (B, Ip, Hb)
    if jp != seq_j:
        # Padded rows/cols only produce garbage entries that are sliced off below.
        hk_b = jnp.pad(hk_b, ((0, 0), (0, jp - seq_j), (0, 0)))       # (B, Jp, Hb)

    wq_t = wq.T.astype(compute_dtype)                                 # (Hb, Hh)
    wk_t = wk.T.astype(compute_dtype)                                 # (Hb, Hh)
    bq2 = bq.reshape(1, hh).astype(jnp.float32)
    bk2 = bk.reshape(1, hh).astype(jnp.float32)
    if hhp != hh:
        # Zero-padded output features contribute exactly 0 to the relation score.
        wq_t = jnp.pad(wq_t, ((0, 0), (0, hhp - hh)))                 # (Hb, Hhp)
        wk_t = jnp.pad(wk_t, ((0, 0), (0, hhp - hh)))
        bq2 = jnp.pad(bq2, ((0, 0), (0, hhp - hh)))                   # (1, Hhp)
        bk2 = jnp.pad(bk2, ((0, 0), (0, hhp - hh)))

    per_batch_elems = ip * hb + jp * hb + ip * jp + (ip + jp) * hhp
    tb = _pick_batch_tile(batch, per_batch_elems)
    n_blocks = batch // tb

    out_padded = pl.pallas_call(
        _relation_kernel,
        out_shape=jax.ShapeDtypeStruct((batch, ip, jp), jnp.float32),
        grid_spec=pltpu.PrefetchScalarGridSpec(
            num_scalar_prefetch=0,
            grid=(n_blocks,),
            in_specs=[
                pl.BlockSpec((tb, ip, hb), lambda b: (b, 0, 0)),
                pl.BlockSpec((tb, jp, hb), lambda b: (b, 0, 0)),
                pl.BlockSpec((hb, hhp), lambda b: (0, 0)),
                pl.BlockSpec((1, hhp), lambda b: (0, 0)),
                pl.BlockSpec((hb, hhp), lambda b: (0, 0)),
                pl.BlockSpec((1, hhp), lambda b: (0, 0)),
            ],
            out_specs=pl.BlockSpec((tb, ip, jp), lambda b: (b, 0, 0)),
        ),
        compiler_params=pltpu.CompilerParams(
            dimension_semantics=("parallel",),
            # Allow XLA to fuse the activation transposes / padding into the kernel's input
            # reads instead of materializing transposed copies in HBM.
            allow_input_fusion=[True, True, False, False, False, False],
        ),
    )(hq_b, hk_b, wq_t, bq2, wk_t, bk2)

    if ip != seq_i or jp != seq_j:
        out_padded = out_padded[:, :seq_i, :seq_j]
    return out_padded


if __name__ == "__main__":
    # Module config (n_relations must be 1 for the original .view(...) to be valid)
    n_relations = 1
    backbone_hidden_size = 32
    head_hidden_size = 32

    # Small shapes
    seq_i, seq_j, batch = 8, 8, 2

    key = jax.random.PRNGKey(0)
    k_hq, k_hk, k_wq, k_bq, k_wk, k_bk, k_dummy = jax.random.split(key, 7)

    h_q = jax.random.normal(k_hq, (seq_i, batch, backbone_hidden_size), dtype=jnp.float32)
    h_k = jax.random.normal(k_hk, (seq_j, batch, backbone_hidden_size), dtype=jnp.float32)

    # Deterministic synthetic parameters matching nn.Linear shapes (weight: (out, in))
    wq = jax.random.normal(k_wq, (n_relations * head_hidden_size, backbone_hidden_size),
                           dtype=jnp.float32) * 0.05
    bq = jax.random.normal(k_bq, (n_relations * head_hidden_size,), dtype=jnp.float32) * 0.05
    wk = jax.random.normal(k_wk, (n_relations * head_hidden_size, backbone_hidden_size),
                           dtype=jnp.float32) * 0.05
    bk = jax.random.normal(k_bk, (n_relations * head_hidden_size,), dtype=jnp.float32) * 0.05
    # dummy_node exists on the module but never participates in forward()
    dummy_node = jax.random.normal(k_dummy, (1, backbone_hidden_size), dtype=jnp.float32)

    # Pure-JAX reference (dropout = identity in eval mode)
    q_ref = jnp.einsum('ibh,oh->ibo', h_q, wq) + bq
    k_ref = jnp.einsum('jbh,oh->jbo', h_k, wk) + bk
    score_ref = jnp.einsum('ibd,jbd->bij', q_ref, k_ref)

    # f32 MXU-input path
    out = jax.block_until_ready(relation_extractor_forward(h_q, h_k, wq, bq, wk, bk))
    assert out.shape == (batch, seq_i, seq_j)
    assert jnp.allclose(out, score_ref, atol=1e-4, rtol=1e-4)

    # bf16 MXU-input / f32-accumulate path (recommended on v6e / v7x)
    out_bf16 = jax.block_until_ready(
        relation_extractor_forward(h_q, h_k, wq, bq, wk, bk, compute_dtype=jnp.bfloat16))
    assert out_bf16.shape == (batch, seq_i, seq_j)
    assert jnp.allclose(out_bf16, score_ref, atol=6e-2, rtol=6e-2)

    # Non-aligned shapes (exercise I/J/Hh padding paths)
    h_q2 = jax.random.normal(k_hq, (7, batch, backbone_hidden_size), dtype=jnp.float32)
    h_k2 = jax.random.normal(k_hk, (11, batch, backbone_hidden_size), dtype=jnp.float32)
    q2 = jnp.einsum('ibh,oh->ibo', h_q2, wq) + bq
    kk2 = jnp.einsum('jbh,oh->jbo', h_k2, wk) + bk
    ref2 = jnp.einsum('ibd,jbd->bij', q2, kk2)
    out2 = jax.block_until_ready(relation_extractor_forward(h_q2, h_k2, wq, bq, wk, bk))
    assert out2.shape == (batch, 7, 11)
    assert jnp.allclose(out2, ref2, atol=1e-4, rtol=1e-4)

    print("KERNEL_OK")
</pallas_src>

<mosaic_0001>
module attributes {stable_mosaic.version = 11 : i64} {
  func.func @_relation_kernel(%arg0: i32, %arg1: memref<1x8x32xf32, #tpu.memory_space<vmem>>, %arg2: memref<1x128x32xf32, #tpu.memory_space<vmem>>, %arg3: memref<32x128xf32, #tpu.memory_space<vmem>>, %arg4: memref<1x128xf32, #tpu.memory_space<vmem>>, %arg5: memref<32x128xf32, #tpu.memory_space<vmem>>, %arg6: memref<1x128xf32, #tpu.memory_space<vmem>>, %arg7: memref<1x8x128xf32, #tpu.memory_space<vmem>>) attributes {dimension_semantics = [#tpu.dimension_semantics<parallel>], iteration_bounds = array<i64: 2>, scalar_prefetch = 0 : i64, scratch_operands = 0 : i64, tpu.core_type = #tpu.core_type<tc>, window_params = [{transform_indices = @transform_0, window_bounds = array<i64: 1, 8, 32>}, {transform_indices = @transform_1, window_bounds = array<i64: 1, 128, 32>}, {pipeline_mode = #tpu.pipeline_mode<synchronous>, transform_indices = @transform_2, window_bounds = array<i64: 32, 128>}, {pipeline_mode = #tpu.pipeline_mode<synchronous>, transform_indices = @transform_3, window_bounds = array<i64: 1, 128>}, {pipeline_mode = #tpu.pipeline_mode<synchronous>, transform_indices = @transform_4, window_bounds = array<i64: 32, 128>}, {pipeline_mode = #tpu.pipeline_mode<synchronous>, transform_indices = @transform_5, window_bounds = array<i64: 1, 128>}, {transform_indices = @transform_6, window_bounds = array<i64: 1, 8, 128>}]} {
    %c0 = arith.constant 0 : index
    %c0_0 = arith.constant 0 : index
    %c0_1 = arith.constant 0 : index
    %0 = vector.load %arg1[%c0, %c0_0, %c0_1] : memref<1x8x32xf32, #tpu.memory_space<vmem>>, vector<1x8x32xf32>
    %1 = vector.shape_cast %0 : vector<1x8x32xf32> to vector<8x32xf32>
    %c0_2 = arith.constant 0 : index
    %c0_3 = arith.constant 0 : index
    %2 = vector.load %arg3[%c0_2, %c0_3] : memref<32x128xf32, #tpu.memory_space<vmem>>, vector<32x128xf32>
    %cst = arith.constant dense<0.000000e+00> : vector<8x128xf32>
    %3 = tpu.matmul %1, %2, %cst {dimension_numbers = #tpu.dot_dimension_numbers<[1], [0], [0], [1], [0, 0, 1, 1], [], []>} : vector<8x32xf32>, vector<32x128xf32>, vector<8x128xf32> -> vector<8x128xf32>
    %c0_4 = arith.constant 0 : index
    %c0_5 = arith.constant 0 : index
    %4 = vector.load %arg4[%c0_4, %c0_5] : memref<1x128xf32, #tpu.memory_space<vmem>>, vector<1x128xf32>
    %5 = vector.broadcast %4 : vector<1x128xf32> to vector<8x128xf32>
    %6 = arith.addf %3, %5 : vector<8x128xf32>
    %c0_6 = arith.constant 0 : index
    %c0_7 = arith.constant 0 : index
    %c0_8 = arith.constant 0 : index
    %7 = vector.load %arg2[%c0_6, %c0_7, %c0_8] : memref<1x128x32xf32, #tpu.memory_space<vmem>>, vector<1x128x32xf32>
    %8 = vector.shape_cast %7 : vector<1x128x32xf32> to vector<128x32xf32>
    %c0_9 = arith.constant 0 : index
    %c0_10 = arith.constant 0 : index
    %9 = vector.load %arg5[%c0_9, %c0_10] : memref<32x128xf32, #tpu.memory_space<vmem>>, vector<32x128xf32>
    %cst_11 = arith.constant dense<0.000000e+00> : vector<128x128xf32>
    %10 = tpu.matmul %8, %9, %cst_11 {dimension_numbers = #tpu.dot_dimension_numbers<[1], [0], [0], [1], [0, 0, 1, 1], [], []>} : vector<128x32xf32>, vector<32x128xf32>, vector<128x128xf32> -> vector<128x128xf32>
    %c0_12 = arith.constant 0 : index
    %c0_13 = arith.constant 0 : index
    %11 = vector.load %arg6[%c0_12, %c0_13] : memref<1x128xf32, #tpu.memory_space<vmem>>, vector<1x128xf32>
    %12 = vector.broadcast %11 : vector<1x128xf32> to vector<128x128xf32>
    %13 = arith.addf %10, %12 : vector<128x128xf32>
    %14 = vector.shape_cast %6 : vector<8x128xf32> to vector<1x8x128xf32>
    %15 = vector.shape_cast %13 : vector<128x128xf32> to vector<1x128x128xf32>
    "tpu.trace_start"() <{level = 10 : i32, message = "bid,bjd->bij"}> : () -> ()
    %cst_14 = arith.constant dense<0.000000e+00> : vector<1x8x128xf32>
    %16 = tpu.matmul %14, %15, %cst_14 {dimension_numbers = #tpu.dot_dimension_numbers<[2], [2], [1], [1], [0, 0, 0, 1, 1, 1], [0], [0]>} : vector<1x8x128xf32>, vector<1x128x128xf32>, vector<1x8x128xf32> -> vector<1x8x128xf32>
    "tpu.trace_stop"() : () -> ()
    %c0_15 = arith.constant 0 : index
    %c0_16 = arith.constant 0 : index
    %c0_17 = arith.constant 0 : index
    %17 = vector.load %arg7[%c0_15, %c0_16, %c0_17] : memref<1x8x128xf32, #tpu.memory_space<vmem>>, vector<1x8x128xf32>
    tpu.vector_store %arg7[%c0_15, %c0_16, %c0_17], %16 {strides = array<i32>} : memref<1x8x128xf32, #tpu.memory_space<vmem>>, vector<1x8x128xf32>,
    return
  }
  func.func @transform_0(%arg0: i32) -> (i32, i32, i32) {
    %c0_i32 = arith.constant 0 : i32
    %c0_i32_0 = arith.constant 0 : i32
    %c0_i32_1 = arith.constant 0 : i32
    return %arg0, %c0_i32, %c0_i32_0 : i32, i32, i32
  }
  func.func @transform_1(%arg0: i32) -> (i32, i32, i32) {
    %c0_i32 = arith.constant 0 : i32
    %c0_i32_0 = arith.constant 0 : i32
    %c0_i32_1 = arith.constant 0 : i32
    return %arg0, %c0_i32, %c0_i32_0 : i32, i32, i32
  }
  func.func @transform_2(%arg0: i32) -> (i32, i32) {
    %c0_i32 = arith.constant 0 : i32
    %c0_i32_0 = arith.constant 0 : i32
    %c0_i32_1 = arith.constant 0 : i32
    return %c0_i32, %c0_i32_0 : i32, i32
  }
  func.func @transform_3(%arg0: i32) -> (i32, i32) {
    %c0_i32 = arith.constant 0 : i32
    %c0_i32_0 = arith.constant 0 : i32
    %c0_i32_1 = arith.constant 0 : i32
    return %c0_i32, %c0_i32_0 : i32, i32
  }
  func.func @transform_4(%arg0: i32) -> (i32, i32) {
    %c0_i32 = arith.constant 0 : i32
    %c0_i32_0 = arith.constant 0 : i32
    %c0_i32_1 = arith.constant 0 : i32
    return %c0_i32, %c0_i32_0 : i32, i32
  }
  func.func @transform_5(%arg0: i32) -> (i32, i32) {
    %c0_i32 = arith.constant 0 : i32
    %c0_i32_0 = arith.constant 0 : i32
    %c0_i32_1 = arith.constant 0 : i32
    return %c0_i32, %c0_i32_0 : i32, i32
  }
  func.func @transform_6(%arg0: i32) -> (i32, i32, i32) {
    %c0_i32 = arith.constant 0 : i32
    %c0_i32_0 = arith.constant 0 : i32
    %c0_i32_1 = arith.constant 0 : i32
    return %arg0, %c0_i32, %c0_i32_0 : i32, i32, i32
  }
}

</mosaic_0001>

<llo_original>
// kernel: tpu_custom_call.1
$region0: #{tpu_custom_call.1}
  #allocation0 [shape = 'u32[]', space=smem, size = 0x4, offset = 0x4, fixed_abs, tag = 'smem constant byte address 0x4 - core index']
  #allocation1 [shape = 'u32[144,128]{1,0:T(1,128)}', space=vmem, size = 0x12000, scoped, tag = 'internal scratch']
  %s0 = inlined_call_operand.vmem [shape: f32[2,8,32], index: 0, kind: input, shape index: {}]
  %s1 = inlined_call_operand.vmem [shape: f32[2,128,32], index: 1, kind: input, shape index: {}]
  %s2 = inlined_call_operand.vmem [shape: f32[32,128], index: 2, kind: input, shape index: {}]
  %s3 = inlined_call_operand.vmem [shape: f32[1,128], index: 3, kind: input, shape index: {}]
  %s4 = inlined_call_operand.vmem [shape: f32[32,128], index: 4, kind: input, shape index: {}]
  %s5 = inlined_call_operand.vmem [shape: f32[1,128], index: 5, kind: input, shape index: {}]
  %s6 = inlined_call_operand.hbm [shape: f32[2,8,128], index: 6, kind: output, shape index: {}]
  %s7 = sld [smem:[#allocation0]]
  $region57: #{tpu_custom_call.1} parent=0
    _
  %s9 = ssub.s32 1, %s7
  %s10 = scalar_select 0, %s9, %s7
  $region1: #{tpu_custom_call.1} parent=0
    #allocation2 [shape = 'u8[8192]{0}', space=vmem, size = 0x2000, scoped, tag = 'output window, operand 0']
    #allocation3 [shape = 's32[2]{0}', space=sflag, size = 0x8, scoped, tag = 'scoped memory for tpu_custom_call.1']
    %11 = vsyncpa [#allocation3], 0
    %s12 = scalar_lea.sflag [#allocation3], 1
    %13 = vsyncpa %s12, 0
    loop: start=0, step=1, limit=4
    $region2: #{tpu_custom_call.1} parent=1 // loop_pre_header
      _
    $region3: #{tpu_custom_call.1} parent=1 // loop_header
      %s15 = sphi 0, %s19
      %p16 = scmp.ge.s32.totalorder %s15, 4
      %s25 = sphi 0, %s27
      %s28 = sphi 0, %s25
      %s29 = sphi 0, %s28
      %s45 = sphi 0, %s29
      %s51 = sphi 0, %s53
      %s54 = sphi 0, %s51
      %s55 = sphi 0, %s54
      %s71 = sphi 0, %s55
      %s75 = sphi 0, %s75
      %s77 = sphi 0, %s75
      %s78 = sphi 0, %s77
      %s92 = sphi 0, %s78
      %s96 = sphi 0, %s96
      %s98 = sphi 0, %s96
      %s99 = sphi 0, %s98
      %s113 = sphi 0, %s99
      %s117 = sphi 0, %s117
      %s119 = sphi 0, %s117
      %s120 = sphi 0, %s119
      %s134 = sphi 0, %s120
      %s138 = sphi 0, %s138
      %s140 = sphi 0, %s138
      %s141 = sphi 0, %s140
      %s155 = sphi 0, %s141
      %s161 = sphi 0, %s163
      %s164 = sphi 0, %s161
      %s165 = sphi 0, %s164
      %s181 = sphi 0, %s165
    $region4: #{tpu_custom_call.1} parent=1 // loop_header_branch
      %18 = sbr.rel (%p16) target = $region8
    $region5: #{tpu_custom_call.1} parent=1 // loop_body
      %s20 = ssub.s32 %s15, 1
      %s21 = ssub.s32 %s15, 2
      %s22 = sadd.s32 %s15, 1
      %s23 = ssub.s32 %s15, %s22
      %p24 = scmp.eq.s32.totalorder %s23, 0
      %s26 = sadd.s32 %s25, 1
      %s27 = scalar_select %p24, %s25, %s26
      %p30 = pneg %p24
      %p31 = scmp.eq.s32.totalorder %s15, 1
      %p32 = por %p30, %p31
      %p33 = scmp.ne.s32.totalorder %s25, %s28
      %p34 = scmp.eq.s32.totalorder %s15, 0
      %p35 = por %p33, %p34
      %p36 = scmp.ne.s32.totalorder %s25, %s28
      %p37 = scmp.eq.s32.totalorder %s20, 1
      %p38 = por %p36, %p37
      %p39 = scmp.ne.s32.totalorder %s28, %s29
      %p40 = scmp.eq.s32.totalorder %s20, 0
      %p41 = por %p39, %p40
      %p42 = scmp.ne.s32.totalorder %s28, %s29
      %p43 = scmp.eq.s32.totalorder %s21, 1
      %p44 = por %p42, %p43
      %p46 = scmp.ne.s32.totalorder %s29, %s45
      %p47 = scmp.eq.s32.totalorder %s21, 0
      %p48 = por %p46, %p47
      %s49 = ssub.s32 %s15, %s22
      %p50 = scmp.eq.s32.totalorder %s49, 0
      %s52 = sadd.s32 %s51, 1
      %s53 = scalar_select %p50, %s51, %s52
      %p56 = pneg %p50
      %p57 = scmp.eq.s32.totalorder %s15, 1
      %p58 = por %p56, %p57
      %p59 = scmp.ne.s32.totalorder %s51, %s54
      %p60 = scmp.eq.s32.totalorder %s15, 0
      %p61 = por %p59, %p60
      %p62 = scmp.ne.s32.totalorder %s51, %s54
      %p63 = scmp.eq.s32.totalorder %s20, 1
      %p64 = por %p62, %p63
      %p65 = scmp.ne.s32.totalorder %s54, %s55
      %p66 = scmp.eq.s32.totalorder %s20, 0
      %p67 = por %p65, %p66
      %p68 = scmp.ne.s32.totalorder %s54, %s55
      %p69 = scmp.eq.s32.totalorder %s21, 1
      %p70 = por %p68, %p69
      %p72 = scmp.ne.s32.totalorder %s55, %s71
      %p73 = scmp.eq.s32.totalorder %s21, 0
      %p74 = por %p72, %p73
      %s76 = sadd.s32 %s75, 1
      %p79 = scmp.eq.s32.totalorder %s15, 1
      %p80 = scmp.ne.s32.totalorder %s75, %s77
      %p81 = scmp.eq.s32.totalorder %s15, 0
      %p82 = por %p80, %p81
      %p83 = scmp.ne.s32.totalorder %s75, %s77
      %p84 = scmp.eq.s32.totalorder %s20, 1
      %p85 = por %p83, %p84
      %p86 = scmp.ne.s32.totalorder %s77, %s78
      %p87 = scmp.eq.s32.totalorder %s20, 0
      %p88 = por %p86, %p87
      %p89 = scmp.ne.s32.totalorder %s77, %s78
      %p90 = scmp.eq.s32.totalorder %s21, 1
      %p91 = por %p89, %p90
      %p93 = scmp.ne.s32.totalorder %s78, %s92
      %p94 = scmp.eq.s32.totalorder %s21, 0
      %p95 = por %p93, %p94
      %s97 = sadd.s32 %s96, 1
      %p100 = scmp.eq.s32.totalorder %s15, 1
      %p101 = scmp.ne.s32.totalorder %s96, %s98
      %p102 = scmp.eq.s32.totalorder %s15, 0
      %p103 = por %p101, %p102
      %p104 = scmp.ne.s32.totalorder %s96, %s98
      %p105 = scmp.eq.s32.totalorder %s20, 1
      %p106 = por %p104, %p105
      %p107 = scmp.ne.s32.totalorder %s98, %s99
      %p108 = scmp.eq.s32.totalorder %s20, 0
      %p109 = por %p107, %p108
      %p110 = scmp.ne.s32.totalorder %s98, %s99
      %p111 = scmp.eq.s32.totalorder %s21, 1
      %p112 = por %p110, %p111
      %p114 = scmp.ne.s32.totalorder %s99, %s113
      %p115 = scmp.eq.s32.totalorder %s21, 0
      %p116 = por %p114, %p115
      %s118 = sadd.s32 %s117, 1
      %p121 = scmp.eq.s32.totalorder %s15, 1
      %p122 = scmp.ne.s32.totalorder %s117, %s119
      %p123 = scmp.eq.s32.totalorder %s15, 0
      %p124 = por %p122, %p123
      %p125 = scmp.ne.s32.totalorder %s117, %s119
      %p126 = scmp.eq.s32.totalorder %s20, 1
      %p127 = por %p125, %p126
      %p128 = scmp.ne.s32.totalorder %s119, %s120
      %p129 = scmp.eq.s32.totalorder %s20, 0
      %p130 = por %p128, %p129
      %p131 = scmp.ne.s32.totalorder %s119, %s120
      %p132 = scmp.eq.s32.totalorder %s21, 1
      %p133 = por %p131, %p132
      %p135 = scmp.ne.s32.totalorder %s120, %s134
      %p136 = scmp.eq.s32.totalorder %s21, 0
      %p137 = por %p135, %p136
      %s139 = sadd.s32 %s138, 1
      %p142 = scmp.eq.s32.totalorder %s15, 1
      %p143 = scmp.ne.s32.totalorder %s138, %s140
      %p144 = scmp.eq.s32.totalorder %s15, 0
      %p145 = por %p143, %p144
      %p146 = scmp.ne.s32.totalorder %s138, %s140
      %p147 = scmp.eq.s32.totalorder %s20, 1
      %p148 = por %p146, %p147
      %p149 = scmp.ne.s32.totalorder %s140, %s141
      %p150 = scmp.eq.s32.totalorder %s20, 0
      %p151 = por %p149, %p150
      %p152 = scmp.ne.s32.totalorder %s140, %s141
      %p153 = scmp.eq.s32.totalorder %s21, 1
      %p154 = por %p152, %p153
      %p156 = scmp.ne.s32.totalorder %s141, %s155
      %p157 = scmp.eq.s32.totalorder %s21, 0
      %p158 = por %p156, %p157
      %s159 = ssub.s32 %s15, %s22
      %p160 = scmp.eq.s32.totalorder %s159, 0
      %s162 = sadd.s32 %s161, 1
      %s163 = scalar_select %p160, %s161, %s162
      %p166 = pneg %p160
      %p167 = scmp.eq.s32.totalorder %s15, 1
      %p168 = por %p166, %p167
      %p169 = scmp.ne.s32.totalorder %s161, %s164
      %p170 = scmp.eq.s32.totalorder %s15, 0
      %p171 = por %p169, %p170
      %p172 = scmp.ne.s32.totalorder %s161, %s164
      %p173 = scmp.eq.s32.totalorder %s20, 1
      %p174 = por %p172, %p173
      %p175 = scmp.ne.s32.totalorder %s164, %s165
      %p176 = scmp.eq.s32.totalorder %s20, 0
      %p177 = por %p175, %p176
      %p178 = scmp.ne.s32.totalorder %s164, %s165
      %p179 = scmp.eq.s32.totalorder %s21, 1
      %p180 = por %p178, %p179
      %p182 = scmp.ne.s32.totalorder %s165, %s181
      %p183 = scmp.eq.s32.totalorder %s21, 0
      %p184 = por %p182, %p183
      %p185 = scmp.le.s32.totalorder 1, %s15
      %p186 = scmp.lt.s32.totalorder %s15, 3
      %p187 = pnand %p185, %p186
      %p188 = pneg %p187
      // Predicated region
      $region9: #{tpu_custom_call.1} parent=5 // pred_check
        _
      $region10: #{tpu_custom_call.1} parent=5 // pred_check_branch
        %190 = sbr.rel (%p187) target = $region12
      $region11: #{tpu_custom_call.1} parent=5 // pred_region
        %s191 = ssub.s32 %s15, 1
        // Predicated region
        $region13: #{tpu_custom_call.1} parent=11 // pred_check
          %p192 = pneg %p88
        $region14: #{tpu_custom_call.1} parent=11 // pred_check_branch
          %194 = sbr.rel (%p192) target = $region16
        $region15: #{tpu_custom_call.1} parent=11 // pred_region
          _
        $region16: #{tpu_custom_call.1} parent=11 // pred_fallthru
          _
        // Predicated region
        $region17: #{tpu_custom_call.1} parent=11 // pred_check
          %p195 = pneg %p109
        $region18: #{tpu_custom_call.1} parent=11 // pred_check_branch
          %197 = sbr.rel (%p195) target = $region20
        $region19: #{tpu_custom_call.1} parent=11 // pred_region
          _
        $region20: #{tpu_custom_call.1} parent=11 // pred_fallthru
          _
        // Predicated region
        $region21: #{tpu_custom_call.1} parent=11 // pred_check
          %p198 = pneg %p130
        $region22: #{tpu_custom_call.1} parent=11 // pred_check_branch
          %200 = sbr.rel (%p198) target = $region24
        $region23: #{tpu_custom_call.1} parent=11 // pred_region
          _
        $region24: #{tpu_custom_call.1} parent=11 // pred_fallthru
          _
        // Predicated region
        $region25: #{tpu_custom_call.1} parent=11 // pred_check
          %p201 = pneg %p151
        $region26: #{tpu_custom_call.1} parent=11 // pred_check_branch
          %203 = sbr.rel (%p201) target = $region28
        $region27: #{tpu_custom_call.1} parent=11 // pred_region
          _
        $region28: #{tpu_custom_call.1} parent=11 // pred_fallthru
          _
      $region12: #{tpu_custom_call.1} parent=5 // pred_fallthru
        _
      %p204 = scmp.lt.s32.totalorder %s15, 2
      // Predicated region
      $region29: #{tpu_custom_call.1} parent=5 // pred_check
        %p205 = pneg %p204
      $region30: #{tpu_custom_call.1} parent=5 // pred_check_branch
        %207 = sbr.rel (%p205) target = $region32
      $region31: #{tpu_custom_call.1} parent=5 // pred_region
        // Predicated region
        $region33: #{tpu_custom_call.1} parent=31 // pred_check
          %p208 = pneg %p35
        $region34: #{tpu_custom_call.1} parent=31 // pred_check_branch
          %210 = sbr.rel (%p208) target = $region36
        $region35: #{tpu_custom_call.1} parent=31 // pred_region
          %p211 = scmp.lt.s32.totalorder %s15, 1
          %s212 = scalar_select %p211, %s15, 1
          %s213 = smul.addr %s212, 8
          %s214 = scalar_lea.vmem %s0, %s213
        $region36: #{tpu_custom_call.1} parent=31 // pred_fallthru
          _
        // Predicated region
        $region37: #{tpu_custom_call.1} parent=31 // pred_check
          %p215 = pneg %p61
        $region38: #{tpu_custom_call.1} parent=31 // pred_check_branch
          %217 = sbr.rel (%p215) target = $region40
        $region39: #{tpu_custom_call.1} parent=31 // pred_region
          %p218 = scmp.lt.s32.totalorder %s15, 1
          %s219 = scalar_select %p218, %s15, 1
          %s220 = smul.addr %s219, 16
          %s221 = smul.addr %s220, 8
          %s222 = scalar_lea.vmem %s1, %s221
        $region40: #{tpu_custom_call.1} parent=31 // pred_fallthru
          _
      $region32: #{tpu_custom_call.1} parent=5 // pred_fallthru
        _
      %p223 = scmp.le.s32.totalorder 1, %s15
      %p224 = scmp.lt.s32.totalorder %s15, 3
      %p225 = pnand %p223, %p224
      %p226 = pneg %p225
      // Predicated region
      $region41: #{tpu_custom_call.1} parent=5 // pred_check
        _
      $region42: #{tpu_custom_call.1} parent=5 // pred_check_branch
        %228 = sbr.rel (%p225) target = $region44
      $region43: #{tpu_custom_call.1} parent=5 // pred_region
        %s229 = ssub.s32 %s15, 1
        %p230 = scmp.lt.s32.totalorder %s20, 1
        %s231 = scalar_select %p230, %s20, 1
        %s232 = smul.addr %s231, 8
        %s233 = scalar_lea.vmem %s0, %s232
        %p234 = pneg %p41
        %p235 = pneg %p38
        %p236 = scmp.lt.s32.totalorder %s20, 1
        %s237 = scalar_select %p236, %s20, 1
        %s238 = smul.addr %s237, 16
        %s239 = smul.addr %s238, 8
        %s240 = scalar_lea.vmem %s1, %s239
        %p241 = pneg %p67
        %p242 = pneg %p64
        %p243 = pneg %p88
        %p244 = pneg %p85
        %p245 = pneg %p109
        %p246 = pneg %p106
        %p247 = pneg %p130
        %p248 = pneg %p127
        %p249 = pneg %p151
        %p250 = pneg %p148
        %p251 = pneg %p177
        %p252 = pneg %p174
        %s253 = sand.u32 %s164, 1
        %s254 = scalar_lea.sflag [#allocation3], %s253
        %s255 = sand.u32 %s164, 1
        %s256 = smul.addr %s255, 8
        %s257 = scalar_lea.vmem [#allocation2], %s256
        %p258 = scmp.lt.s32.totalorder %s20, 1
        %s259 = scalar_select %p258, %s20, 1
        %s260 = smul.addr %s259, 8
        %s261 = scalar_lea.vmem %s0, %s260
        %p262 = scmp.lt.s32.totalorder %s20, 1
        %s263 = scalar_select %p262, %s20, 1
        %s264 = smul.addr %s263, 16
        %s265 = smul.addr %s264, 8
        %s266 = scalar_lea.vmem %s1, %s265
        %v267 = vld [vmem:[%s261] sm:$0xff]
        %v268 = vld [vmem:[%s2] sm:$0xff]
        %v269 = vld [vmem:[%s2 + $0x8] sm:$0xff]
        %v270 = vld [vmem:[%s2 + $0x10] sm:$0xff]
        %v271 = vld [vmem:[%s2 + $0x18] sm:$0xff]
        %v272 = vld [vmem:[%s3] sm:$0x1]
        %v274 = vlaneseq
        %v275 = vshrl.u32 %v274, 7
        %v276 = vsub.s32 0, %v275
        %v277 = vrot.slane %v272, %v276
        %vm279 = vcmask 261120
        %v281 = vsel %vm279, %v267, 0
        %283 = vmatprep.subr.mxu0 0.0
        %284 = vmatpush1.msra.mxu0 0.0
        %285 = vmatprep.subr.mxu0 0.0
        %286 = vmatpush1.msra.mxu0 0.0
        %287 = vmatprep.subr.mxu0 0.0
        %288 = vmatpush1.msra.mxu0 0.0
        %289 = vmatprep.subr.mxu0 0.0
        %290 = vmatpush1.msra.mxu0 0.0
        %291 = vmatprep.subr.mxu0 0.0
        %292 = vmatpush1.msra.mxu0 0.0
        %293 = vmatprep.subr.mxu0 0.0
        %294 = vmatpush1.msra.mxu0 0.0
        %295 = vmatprep.subr.mxu0 0.0
        %296 = vmatpush1.msra.mxu0 0.0
        %297 = vmatprep.subr.mxu0 0.0
        %298 = vmatpush1.msra.mxu0 0.0
        %299 = vmatprep.subr.mxu0 0.0
        %300 = vmatpush1.msra.mxu0 0.0
        %301 = vmatprep.subr.mxu0 0.0
        %302 = vmatpush1.msra.mxu0 0.0
        %303 = vmatprep.subr.mxu0 0.0
        %304 = vmatpush1.msra.mxu0 0.0
        %305 = vmatprep.subr.mxu0 0.0
        %306 = vmatpush1.msra.mxu0 0.0
        %307 = vmatprep.subr.mxu0 0.0
        %308 = vmatpush1.msra.mxu0 %v271
        %309 = vmatprep.subr.mxu0 0.0
        %310 = vmatpush1.msra.mxu0 %v270
        %311 = vmatprep.subr.mxu0 0.0
        %312 = vmatpush1.msra.mxu0 %v269
        %313 = vmatprep.subr.mxu0 0.0
        %314 = vmatpush1.msra.mxu0 %v268
        %315 = vmatprep.subr.mxu0 0.0
        %316 = vmatpush2.msra.mxu0 0.0
        %317 = vmatprep.subr.mxu0 0.0
        %318 = vmatpush2.msra.mxu0 0.0
        %319 = vmatprep.subr.mxu0 0.0
        %320 = vmatpush2.msra.mxu0 0.0
        %321 = vmatprep.subr.mxu0 0.0
        %322 = vmatpush2.msra.mxu0 0.0
        %323 = vmatprep.subr.mxu0 0.0
        %324 = vmatpush2.msra.mxu0 0.0
        %325 = vmatprep.subr.mxu0 0.0
        %326 = vmatpush2.msra.mxu0 0.0
        %327 = vmatprep.subr.mxu0 0.0
        %328 = vmatpush2.msra.mxu0 0.0
        %329 = vmatprep.subr.mxu0 0.0
        %330 = vmatpush2.msra.mxu0 0.0
        %331 = vmatprep.subr.mxu0 0.0
        %332 = vmatpush2.msra.mxu0 0.0
        %333 = vmatprep.subr.mxu0 0.0
        %334 = vmatpush2.msra.mxu0 0.0
        %335 = vmatprep.subr.mxu0 0.0
        %336 = vmatpush2.msra.mxu0 0.0
        %337 = vmatprep.subr.mxu0 0.0
        %338 = vmatpush2.msra.mxu0 0.0
        %339 = vmatprep.subr.mxu0 0.0
        %340 = vmatpush2.msra.mxu0 0.0
        %341 = vmatprep.subr.mxu0 0.0
        %342 = vmatpush2.msra.mxu0 0.0
        %343 = vmatprep.subr.mxu0 0.0
        %344 = vmatpush2.msra.mxu0 0.0
        %345 = vmatprep.subr.mxu0 0.0
        %346 = vmatpush2.msra.mxu0 0.0
        %347 = vmatprep.mubr.f32.mxu0 0.0
        %348 = vmatmul.mubr.f32.gmra.mxu0 %v281
        %v349 = vpop.f32.mrf.mxu0
        %v350 = vadd.f32 %v277, %v349
        %v351 = vpop.f32.mrf.mxu0
        %352 = vdwg.mxu0
        %v353 = vld [vmem:[%s266] sm:$0xff]
        %v354 = vld [vmem:[%s266 + $0x8] sm:$0xff]
        %v355 = vld [vmem:[%s266 + $0x10] sm:$0xff]
        %v356 = vld [vmem:[%s266 + $0x18] sm:$0xff]
        %v357 = vld [vmem:[%s266 + $0x20] sm:$0xff]
        %v358 = vld [vmem:[%s266 + $0x28] sm:$0xff]
        %v359 = vld [vmem:[%s266 + $0x30] sm:$0xff]
        %v360 = vld [vmem:[%s266 + $0x38] sm:$0xff]
        %v361 = vld [vmem:[%s266 + $0x40] sm:$0xff]
        %v362 = vld [vmem:[%s266 + $0x48] sm:$0xff]
        %v363 = vld [vmem:[%s266 + $0x50] sm:$0xff]
        %v364 = vld [vmem:[%s266 + $0x58] sm:$0xff]
        %v365 = vld [vmem:[%s266 + $0x60] sm:$0xff]
        %v366 = vld [vmem:[%s266 + $0x68] sm:$0xff]
        %v367 = vld [vmem:[%s266 + $0x70] sm:$0xff]
        %v368 = vld [vmem:[%s266 + $0x78] sm:$0xff]
        %v369 = vld [vmem:[%s4] sm:$0xff]
        %v370 = vld [vmem:[%s4 + $0x8] sm:$0xff]
        %v371 = vld [vmem:[%s4 + $0x10] sm:$0xff]
        %v372 = vld [vmem:[%s4 + $0x18] sm:$0xff]
        %v373 = vld [vmem:[%s5] sm:$0x1]
        %v375 = vlaneseq
        %v376 = vshrl.u32 %v375, 7
        %v377 = vsub.s32 0, %v376
        %v378 = vrot.slane %v373, %v377
        %v381 = vsel %vm279, %v353, 0
        %v384 = vsel %vm279, %v354, 0
        %v387 = vsel %vm279, %v355, 0
        %v390 = vsel %vm279, %v356, 0
        %v393 = vsel %vm279, %v357, 0
        %v396 = vsel %vm279, %v358, 0
        %v399 = vsel %vm279, %v359, 0
        %v402 = vsel %vm279, %v360, 0
        %v405 = vsel %vm279, %v361, 0
        %v408 = vsel %vm279, %v362, 0
        %v411 = vsel %vm279, %v363, 0
        %v414 = vsel %vm279, %v364, 0
        %v417 = vsel %vm279, %v365, 0
        %v420 = vsel %vm279, %v366, 0
        %v423 = vsel %vm279, %v367, 0
        %v426 = vsel %vm279, %v368, 0
        %428 = vmatprep.subr.mxu0 0.0
        %429 = vmatpush1.msra.mxu0 0.0
        %430 = vmatprep.subr.mxu0 0.0
        %431 = vmatpush1.msra.mxu0 0.0
        %432 = vmatprep.subr.mxu0 0.0
        %433 = vmatpush1.msra.mxu0 0.0
        %434 = vmatprep.subr.mxu0 0.0
        %435 = vmatpush1.msra.mxu0 0.0
        %436 = vmatprep.subr.mxu0 0.0
        %437 = vmatpush1.msra.mxu0 0.0
        %438 = vmatprep.subr.mxu0 0.0
        %439 = vmatpush1.msra.mxu0 0.0
        %440 = vmatprep.subr.mxu0 0.0
        %441 = vmatpush1.msra.mxu0 0.0
        %442 = vmatprep.subr.mxu0 0.0
        %443 = vmatpush1.msra.mxu0 0.0
        %444 = vmatprep.subr.mxu0 0.0
        %445 = vmatpush1.msra.mxu0 0.0
        %446 = vmatprep.subr.mxu0 0.0
        %447 = vmatpush1.msra.mxu0 0.0
        %448 = vmatprep.subr.mxu0 0.0
        %449 = vmatpush1.msra.mxu0 0.0
        %450 = vmatprep.subr.mxu0 0.0
        %451 = vmatpush1.msra.mxu0 0.0
        %452 = vmatprep.subr.mxu0 0.0
        %453 = vmatpush1.msra.mxu0 %v372
        %454 = vmatprep.subr.mxu0 0.0
        %455 = vmatpush1.msra.mxu0 %v371
        %456 = vmatprep.subr.mxu0 0.0
        %457 = vmatpush1.msra.mxu0 %v370
        %458 = vmatprep.subr.mxu0 0.0
        %459 = vmatpush1.msra.mxu0 %v369
        %460 = vmatprep.subr.mxu0 0.0
        %461 = vmatpush2.msra.mxu0 0.0
        %462 = vmatprep.subr.mxu0 0.0
        %463 = vmatpush2.msra.mxu0 0.0
        %464 = vmatprep.subr.mxu0 0.0
        %465 = vmatpush2.msra.mxu0 0.0
        %466 = vmatprep.subr.mxu0 0.0
        %467 = vmatpush2.msra.mxu0 0.0
        %468 = vmatprep.subr.mxu0 0.0
        %469 = vmatpush2.msra.mxu0 0.0
        %470 = vmatprep.subr.mxu0 0.0
        %471 = vmatpush2.msra.mxu0 0.0
        %472 = vmatprep.subr.mxu0 0.0
        %473 = vmatpush2.msra.mxu0 0.0
        %474 = vmatprep.subr.mxu0 0.0
        %475 = vmatpush2.msra.mxu0 0.0
        %476 = vmatprep.subr.mxu0 0.0
        %477 = vmatpush2.msra.mxu0 0.0
        %478 = vmatprep.subr.mxu0 0.0
        %479 = vmatpush2.msra.mxu0 0.0
        %480 = vmatprep.subr.mxu0 0.0
        %481 = vmatpush2.msra.mxu0 0.0
        %482 = vmatprep.subr.mxu0 0.0
        %483 = vmatpush2.msra.mxu0 0.0
        %484 = vmatprep.subr.mxu0 0.0
        %485 = vmatpush2.msra.mxu0 0.0
        %486 = vmatprep.subr.mxu0 0.0
        %487 = vmatpush2.msra.mxu0 0.0
        %488 = vmatprep.subr.mxu0 0.0
        %489 = vmatpush2.msra.mxu0 0.0
        %490 = vmatprep.subr.mxu0 0.0
        %491 = vmatpush2.msra.mxu0 0.0
        %492 = vmatprep.mubr.f32.mxu0 0.0
        %493 = vmatmul.mubr.f32.gmra.mxu0 %v381
        %v494 = vpop.f32.mrf.mxu0
        %v495 = vadd.f32 %v378, %v494
        %v496 = vpop.f32.mrf.mxu0
        %497 = vmatprep.mubr.f32.mxu0 0.0
        %498 = vmatmul.mubr.f32.gmra.mxu0 %v384
        %v499 = vpop.f32.mrf.mxu0
        %v500 = vadd.f32 %v378, %v499
        %v501 = vpop.f32.mrf.mxu0
        %502 = vmatprep.mubr.f32.mxu0 0.0
        %503 = vmatmul.mubr.f32.gmra.mxu0 %v387
        %v504 = vpop.f32.mrf.mxu0
        %v505 = vadd.f32 %v378, %v504
        %v506 = vpop.f32.mrf.mxu0
        %507 = vmatprep.mubr.f32.mxu0 0.0
        %508 = vmatmul.mubr.f32.gmra.mxu0 %v390
        %v509 = vpop.f32.mrf.mxu0
        %v510 = vadd.f32 %v378, %v509
        %v511 = vpop.f32.mrf.mxu0
        %512 = vmatprep.mubr.f32.mxu0 0.0
        %513 = vmatmul.mubr.f32.gmra.mxu0 %v393
        %v514 = vpop.f32.mrf.mxu0
        %v515 = vadd.f32 %v378, %v514
        %v516 = vpop.f32.mrf.mxu0
        %517 = vmatprep.mubr.f32.mxu0 0.0
        %518 = vmatmul.mubr.f32.gmra.mxu0 %v396
        %v519 = vpop.f32.mrf.mxu0
        %v520 = vadd.f32 %v378, %v519
        %v521 = vpop.f32.mrf.mxu0
        %522 = vmatprep.mubr.f32.mxu0 0.0
        %523 = vmatmul.mubr.f32.gmra.mxu0 %v399
        %v524 = vpop.f32.mrf.mxu0
        %v525 = vadd.f32 %v378, %v524
        %v526 = vpop.f32.mrf.mxu0
        %527 = vmatprep.mubr.f32.mxu0 0.0
        %528 = vmatmul.mubr.f32.gmra.mxu0 %v402
        %v529 = vpop.f32.mrf.mxu0
        %v530 = vadd.f32 %v378, %v529
        %v531 = vpop.f32.mrf.mxu0
        %532 = vmatprep.mubr.f32.mxu0 0.0
        %533 = vmatmul.mubr.f32.gmra.mxu0 %v405
        %v534 = vpop.f32.mrf.mxu0
        %v535 = vadd.f32 %v378, %v534
        %v536 = vpop.f32.mrf.mxu0
        %537 = vmatprep.mubr.f32.mxu0 0.0
        %538 = vmatmul.mubr.f32.gmra.mxu0 %v408
        %v539 = vpop.f32.mrf.mxu0
        %v540 = vadd.f32 %v378, %v539
        %v541 = vpop.f32.mrf.mxu0
        %542 = vmatprep.mubr.f32.mxu0 0.0
        %543 = vmatmul.mubr.f32.gmra.mxu0 %v411
        %v544 = vpop.f32.mrf.mxu0
        %v545 = vadd.f32 %v378, %v544
        %v546 = vpop.f32.mrf.mxu0
        %547 = vmatprep.mubr.f32.mxu0 0.0
        %548 = vmatmul.mubr.f32.gmra.mxu0 %v414
        %v549 = vpop.f32.mrf.mxu0
        %v550 = vadd.f32 %v378, %v549
        %v551 = vpop.f32.mrf.mxu0
        %552 = vmatprep.mubr.f32.mxu0 0.0
        %553 = vmatmul.mubr.f32.gmra.mxu0 %v417
        %v554 = vpop.f32.mrf.mxu0
        %v555 = vadd.f32 %v378, %v554
        %v556 = vpop.f32.mrf.mxu0
        %557 = vmatprep.mubr.f32.mxu0 0.0
        %558 = vmatmul.mubr.f32.gmra.mxu0 %v420
        %v559 = vpop.f32.mrf.mxu0
        %v560 = vadd.f32 %v378, %v559
        %v561 = vpop.f32.mrf.mxu0
        %562 = vmatprep.mubr.f32.mxu0 0.0
        %563 = vmatmul.mubr.f32.gmra.mxu0 %v423
        %v564 = vpop.f32.mrf.mxu0
        %v565 = vadd.f32 %v378, %v564
        %v566 = vpop.f32.mrf.mxu0
        %567 = vmatprep.mubr.f32.mxu0 0.0
        %568 = vmatmul.mubr.f32.gmra.mxu0 %v426
        %v569 = vpop.f32.mrf.mxu0
        %v570 = vadd.f32 %v378, %v569
        %v571 = vpop.f32.mrf.mxu0
        %572 = vdwg.mxu0
        %573 = vmatprep.subr.mxu0 0.0
        %574 = vmatpush1.xpose.msra.mxu0 %v570
        %575 = vmatprep.subr.mxu0 0.0
        %576 = vmatpush1.xpose.msra.mxu0 %v565
        %577 = vmatprep.subr.mxu0 0.0
        %578 = vmatpush1.xpose.msra.mxu0 %v560
        %579 = vmatprep.subr.mxu0 0.0
        %580 = vmatpush1.xpose.msra.mxu0 %v555
        %581 = vmatprep.subr.mxu0 0.0
        %582 = vmatpush1.xpose.msra.mxu0 %v550
        %583 = vmatprep.subr.mxu0 0.0
        %584 = vmatpush1.xpose.msra.mxu0 %v545
        %585 = vmatprep.subr.mxu0 0.0
        %586 = vmatpush1.xpose.msra.mxu0 %v540
        %587 = vmatprep.subr.mxu0 0.0
        %588 = vmatpush1.xpose.msra.mxu0 %v535
        %589 = vmatprep.subr.mxu0 0.0
        %590 = vmatpush1.xpose.msra.mxu0 %v530
        %591 = vmatprep.subr.mxu0 0.0
        %592 = vmatpush1.xpose.msra.mxu0 %v525
        %593 = vmatprep.subr.mxu0 0.0
        %594 = vmatpush1.xpose.msra.mxu0 %v520
        %595 = vmatprep.subr.mxu0 0.0
        %596 = vmatpush1.xpose.msra.mxu0 %v515
        %597 = vmatprep.subr.mxu0 0.0
        %598 = vmatpush1.xpose.msra.mxu0 %v510
        %599 = vmatprep.subr.mxu0 0.0
        %600 = vmatpush1.xpose.msra.mxu0 %v505
        %601 = vmatprep.subr.mxu0 0.0
        %602 = vmatpush1.xpose.msra.mxu0 %v500
        %603 = vmatprep.subr.mxu0 0.0
        %604 = vmatpush1.xpose.msra.mxu0 %v495
        %605 = vmatprep.subr.mxu0 0.0
        %606 = vmatpush2.xpose.msra.mxu0 0.0
        %607 = vmatprep.subr.mxu0 0.0
        %608 = vmatpush2.xpose.msra.mxu0 0.0
        %609 = vmatprep.subr.mxu0 0.0
        %610 = vmatpush2.xpose.msra.mxu0 0.0
        %611 = vmatprep.subr.mxu0 0.0
        %612 = vmatpush2.xpose.msra.mxu0 0.0
        %613 = vmatprep.subr.mxu0 0.0
        %614 = vmatpush2.xpose.msra.mxu0 0.0
        %615 = vmatprep.subr.mxu0 0.0
        %616 = vmatpush2.xpose.msra.mxu0 0.0
        %617 = vmatprep.subr.mxu0 0.0
        %618 = vmatpush2.xpose.msra.mxu0 0.0
        %619 = vmatprep.subr.mxu0 0.0
        %620 = vmatpush2.xpose.msra.mxu0 0.0
        %621 = vmatprep.subr.mxu0 0.0
        %622 = vmatpush2.xpose.msra.mxu0 0.0
        %623 = vmatprep.subr.mxu0 0.0
        %624 = vmatpush2.xpose.msra.mxu0 0.0
        %625 = vmatprep.subr.mxu0 0.0
        %626 = vmatpush2.xpose.msra.mxu0 0.0
        %627 = vmatprep.subr.mxu0 0.0
        %628 = vmatpush2.xpose.msra.mxu0 0.0
        %629 = vmatprep.subr.mxu0 0.0
        %630 = vmatpush2.xpose.msra.mxu0 0.0
        %631 = vmatprep.subr.mxu0 0.0
        %632 = vmatpush2.xpose.msra.mxu0 0.0
        %633 = vmatprep.subr.mxu0 0.0
        %634 = vmatpush2.xpose.msra.mxu0 0.0
        %635 = vmatprep.subr.mxu0 0.0
        %636 = vmatpush2.xpose.msra.mxu0 0.0
        %637 = vmatprep.mubr.f32.mxu0 0.0
        %638 = vmatmul.mubr.f32.gmra.mxu0 %v350
        %v639 = vpop.f32.mrf.mxu0
        %v640 = vadd.f32 0.0, %v639
        %v641 = vpop.f32.mrf.mxu0
        %642 = vdwg.mxu0
        %643 = vst [vmem:[%s257] sm:$0xff] %v640
        %s644 = sand.u32 %s164, 1
        %s645 = scalar_lea.sflag [#allocation3], %s644
        %s646 = sand.u32 %s164, 1
        %s647 = smul.addr %s646, 8
        %s648 = scalar_lea.vmem [#allocation2], %s647
        // Predicated region
        $region45: #{tpu_custom_call.1} parent=43 // pred_check
          %p649 = pneg %p174
        $region46: #{tpu_custom_call.1} parent=43 // pred_check_branch
          %651 = sbr.rel (%p649) target = $region48
        $region47: #{tpu_custom_call.1} parent=43 // pred_region
          %s653 = ssub.s32 128, 128
          %654 = vsyncadd %s645, %s653
          %s655 = smul.addr %s20, 128
          %s656 = scalar_lea.hbm %s6, %s655
          %s658 = sshll.u32 %s648, 4
          %s659 = int_to_ptr.vmem [resolvable:$true] %s658
          %661 = dma.vmem_to_hbm [thread:$0]  %s659, 128, %s656, %s645
        $region48: #{tpu_custom_call.1} parent=43 // pred_fallthru
          _
      $region44: #{tpu_custom_call.1} parent=5 // pred_fallthru
        _
      %p662 = scmp.le.s32.totalorder 2, %s15
      // Predicated region
      $region49: #{tpu_custom_call.1} parent=5 // pred_check
        %p663 = pneg %p662
      $region50: #{tpu_custom_call.1} parent=5 // pred_check_branch
        %665 = sbr.rel (%p663) target = $region52
      $region51: #{tpu_custom_call.1} parent=5 // pred_region
        %s666 = ssub.s32 %s15, 2
        // Predicated region
        $region53: #{tpu_custom_call.1} parent=51 // pred_check
          %p667 = pneg %p180
        $region54: #{tpu_custom_call.1} parent=51 // pred_check_branch
          %669 = sbr.rel (%p667) target = $region56
        $region55: #{tpu_custom_call.1} parent=51 // pred_region
          %s670 = sand.u32 %s165, 1
          %s671 = scalar_lea.sflag [#allocation3], %s670
          %s672 = sand.u32 %s165, 1
          %s673 = smul.addr %s672, 8
          %s674 = scalar_lea.vmem [#allocation2], %s673
          %675 = dma.done %s671, 128
        $region56: #{tpu_custom_call.1} parent=51 // pred_fallthru
          _
      $region52: #{tpu_custom_call.1} parent=5 // pred_fallthru
        _
    $region6: #{tpu_custom_call.1} parent=1 // loop_footer
      %s19 = sadd.s32 1, %s15
    $region7: #{tpu_custom_call.1} parent=1 // loop_footer_branch
      %14 = sbr.rel target = $region3
    $region8: #{tpu_custom_call.1} parent=1 // loop_exit
      _
    %676 = vsyncpa [#allocation3], 1
    %s677 = scalar_lea.sflag [#allocation3], 1
    %678 = vsyncpa %s677, 1

</llo_original>
